<compile_context>
chip_gen: v5e
topology: v5e:2x2
jax: 0.10.0
libtpu: 0.0.40
codegen_flags: <defaults>
</compile_context>

<pallas_src>
import functools

import jax
import jax.numpy as jnp
from jax.experimental import pallas as pl
from jax.experimental.pallas import tpu as pltpu


IN_DIM = 4          # CartPole-v1 observation dim
OUT_DIM = 2         # CartPole-v1 action dim
HIDDEN = (512, 256, 128)
K_PAD = 8           # layer-1 contraction dim padded for clean MXU layout
OUT_PAD = 128       # lane-dense padded output width


def _round_up(x, m):
    return ((x + m - 1) // m) * m


def _tile_rows(batch, tm_max=2048):
    """Batch tile size: one step for tiny batches, >=2 big steps for rollouts."""
    batch = max(batch, 1)
    if batch <= 256:
        return _round_up(batch, 16)          # single grid step (get_action path)
    half = _round_up(-(-batch // 2), 16)     # split in two -> even grid for v7x
    return min(half, tm_max)


def _default_bf16_epilogue():
    """bf16 bias/ReLU epilogues on chips with a bf16 VPU (v6e/v7x); f32 on v5e."""
    try:
        kind = jax.devices()[0].device_kind.lower()
    except Exception:
        return True
    return not ("v5e" in kind or "v5 lite" in kind or "v5lite" in kind)


# ----------------------------------------------------------------------------
# Kernel
# ----------------------------------------------------------------------------
def reinforce_kernel(x_ref,
                     w1_ref, b1_ref,
                     w2_ref, b2_ref,
                     w3_ref, b3_ref,
                     w4_ref, b4_ref,
                     o_ref):
    def hidden(acc_f32, b_ref):
        # Bias + ReLU in the bias dtype (bf16 on v6e/v7x, f32 on v5e), then
        # hand a bf16 operand straight to the next MXU pass.
        h = jnp.maximum(acc_f32.astype(b_ref.dtype) + b_ref[...], 0.0)
        return h.astype(jnp.bfloat16)

    # Layers 1-3: bf16 MXU matmuls with f32 accumulation (layer 1 K padded to 8).
    h = hidden(jnp.dot(x_ref[...], w1_ref[...],
                       preferred_element_type=jnp.float32), b1_ref)
    h = hidden(jnp.dot(h, w2_ref[...],
                       preferred_element_type=jnp.float32), b2_ref)
    h = hidden(jnp.dot(h, w3_ref[...],
                       preferred_element_type=jnp.float32), b3_ref)

    # Layer 4 + softmax: 2-class softmax == sigmoid of the logit difference.
    # The packed weight/bias put (l0 - l1) in lane 0 and (l1 - l0) in lane 1,
    # so p0 = sigmoid(d), p1 = sigmoid(-d) with p0 + p1 = 1 to f32 rounding.
    # No cross-lane reductions needed.  Pad lanes evaluate to 0.5 and are
    # sliced away by the wrapper.
    d = jnp.dot(h, w4_ref[...], preferred_element_type=jnp.float32) + b4_ref[...]
    p = 1.0 / (1.0 + jnp.exp(-d))
    o_ref[...] = p.astype(o_ref.dtype)


# ----------------------------------------------------------------------------
# Parameter init / packing
# ----------------------------------------------------------------------------
def init_params(key, in_dim=IN_DIM, out_dim=OUT_DIM, hidden=HIDDEN):
    """PyTorch-style (uniform +-1/sqrt(fan_in)) init; weights stored [in, out]."""
    dims = (in_dim,) + hidden + (out_dim,)
    params = []
    for i in range(len(dims) - 1):
        fan_in, fan_out = dims[i], dims[i + 1]
        key, kw, kb = jax.random.split(key, 3)
        bound = 1.0 / jnp.sqrt(fan_in)
        w = jax.random.uniform(kw, (fan_in, fan_out), jnp.float32, -bound, bound)
        b = jax.random.uniform(kb, (1, fan_out), jnp.float32, -bound, bound)
        params.append((w, b))
    return params


def pack_params(params, *, bf16_epilogue=True):
    """Kernel-layout params (do this ONCE, outside the forward).

    bf16 MXU weights; biases in the epilogue dtype; layer-1 K padded to 8;
    final layer packed as difference logits for the sigmoid softmax.
    """
    (w1, b1), (w2, b2), (w3, b3), (w4, b4) = params
    assert w4.shape[1] == OUT_DIM == 2, "difference-logit softmax assumes 2 actions"
    ep = jnp.bfloat16 if bf16_epilogue else jnp.float32

    # Layer 1: pad K from 4 to 8 with zero rows (exact zeros -> no effect).
    w1p = jnp.zeros((K_PAD, w1.shape[1]), jnp.float32).at[:w1.shape[0], :].set(w1)

    # Layer 4: lane 0 computes (l0 - l1), lane 1 computes (l1 - l0), rest zero.
    wd = w4[:, 0] - w4[:, 1]
    bd = b4[0, 0] - b4[0, 1]
    w4p = jnp.zeros((w4.shape[0], OUT_PAD), jnp.float32)
    w4p = w4p.at[:, 0].set(wd).at[:, 1].set(-wd)
    b4p = jnp.zeros((1, OUT_PAD), jnp.float32).at[0, 0].set(bd).at[0, 1].set(-bd)

    return (w1p.astype(jnp.bfloat16), b1.astype(ep),
            w2.astype(jnp.bfloat16), b2.astype(ep),
            w3.astype(jnp.bfloat16), b3.astype(ep),
            w4p.astype(jnp.bfloat16), b4p)          # final bias stays f32


# ----------------------------------------------------------------------------
# Forward wrapper
# ----------------------------------------------------------------------------
@functools.partial(jax.jit, static_argnames=("out_dtype", "tm_max"))
def reinforce_forward(x, packed, *, out_dtype=jnp.float32, tm_max=2048):
    """Fused MLP + softmax on a batch of states [B, IN_DIM] -> [B, OUT_DIM]."""
    B = x.shape[0]
    TM = _tile_rows(B, tm_max)
    B_pad = _round_up(B, TM)

    # Pad batch / feature dims and cast the streamed activations to bf16 once
    # here (fused under jit) so the layer-1 MXU operand is ready-made.
    xp = jnp.pad(x.astype(jnp.bfloat16),
                 ((0, B_pad - B), (0, K_PAD - IN_DIM)))

    w1, b1, w2, b2, w3, b3, w4, b4 = packed
    H1, H2, H3 = HIDDEN
    resident = lambda i: (0, 0)          # weights/biases: same block every step

    out = pl.pallas_call(
        reinforce_kernel,
        out_shape=jax.ShapeDtypeStruct((B_pad, OUT_PAD), out_dtype),
        grid_spec=pltpu.PrefetchScalarGridSpec(
            num_scalar_prefetch=0,
            grid=(B_pad // TM,),
            in_specs=[
                pl.BlockSpec((TM, K_PAD), lambda i: (i, 0)),    # x: streamed
                pl.BlockSpec((K_PAD, H1), resident),            # w1
                pl.BlockSpec((1, H1), resident),                # b1
                pl.BlockSpec((H1, H2), resident),               # w2
                pl.BlockSpec((1, H2), resident),                # b2
                pl.BlockSpec((H2, H3), resident),               # w3
                pl.BlockSpec((1, H3), resident),                # b3
                pl.BlockSpec((H3, OUT_PAD), resident),          # w4 (diff-packed)
                pl.BlockSpec((1, OUT_PAD), resident),           # b4 (diff-packed)
            ],
            out_specs=pl.BlockSpec((TM, OUT_PAD), lambda i: (i, 0)),
        ),
        compiler_params=pltpu.CompilerParams(
            dimension_semantics=("parallel",),
            vmem_limit_bytes=32 * 1024 * 1024),
    )(xp, w1, b1, w2, b2, w3, b3, w4, b4)

    return out[:B, :OUT_DIM].astype(jnp.float32)


# TODO(synk): get_action's categorical sampling / log-prob bookkeeping is
# host-side glue in the original module and stays outside the kernel.


# ----------------------------------------------------------------------------
# References
# ----------------------------------------------------------------------------
def reinforce_reference(x, params):
    """Pure-f32 JAX reference (matches the PyTorch module)."""
    h = x
    for i, (w, b) in enumerate(params):
        h = h @ w + b
        if i < len(params) - 1:
            h = jnp.maximum(h, 0.0)
    return jax.nn.softmax(h, axis=-1)


def reinforce_reference_matched(x, params, *, bf16_epilogue=True):
    """Reference at the kernel's precision (bf16 MXU, f32 acc, same epilogues)."""
    ep = jnp.bfloat16 if bf16_epilogue else jnp.float32
    (w1, b1), (w2, b2), (w3, b3), (w4, b4) = params
    h = x.astype(jnp.bfloat16)
    for w, b in ((w1, b1), (w2, b2), (w3, b3)):
        acc = jnp.dot(h, w.astype(jnp.bfloat16),
                      preferred_element_type=jnp.float32)
        h = jnp.maximum(acc.astype(ep) + b.astype(ep), 0.0).astype(jnp.bfloat16)
    wd = (w4[:, 0] - w4[:, 1]).astype(jnp.bfloat16)
    bd = b4[0, 0] - b4[0, 1]
    d = jnp.dot(h, wd, preferred_element_type=jnp.float32) + bd
    return jnp.stack([jax.nn.sigmoid(d), jax.nn.sigmoid(-d)], axis=-1)


if __name__ == "__main__":
    key = jax.random.PRNGKey(0)
    k_params, k_x, k_big = jax.random.split(key, 3)

    params = init_params(k_params)
    use_bf16_ep = _default_bf16_epilogue()
    packed = pack_params(params, bf16_epilogue=use_bf16_ep)   # pack ONCE

    # Small batch (the get_action-style usage in the original module).
    x_small = jax.random.normal(k_x, (2, IN_DIM), dtype=jnp.float32)
    probs_small = jax.block_until_ready(reinforce_forward(x_small, packed))

    ref_matched = reinforce_reference_matched(x_small, params,
                                              bf16_epilogue=use_bf16_ep)
    ref_f32 = reinforce_reference(x_small, params)
    assert probs_small.shape == (2, OUT_DIM)
    assert jnp.allclose(probs_small, ref_matched, atol=5e-3, rtol=5e-3)
    assert jnp.allclose(probs_small, ref_f32, atol=3e-2, rtol=3e-2)
    assert jnp.allclose(jnp.sum(probs_small, axis=-1), 1.0, atol=1e-5)

    # Larger batch exercising the multi-step grid / resident-weight path.
    x_big = jax.random.normal(k_big, (1000, IN_DIM), dtype=jnp.float32)
    probs_big = jax.block_until_ready(reinforce_forward(x_big, packed))
    ref_big = reinforce_reference_matched(x_big, params,
                                          bf16_epilogue=use_bf16_ep)
    assert probs_big.shape == (1000, OUT_DIM)
    assert jnp.allclose(probs_big, ref_big, atol=5e-3, rtol=5e-3)
    assert jnp.allclose(jnp.sum(probs_big, axis=-1), 1.0, atol=1e-5)

    print("KERNEL_OK")
</pallas_src>

<mosaic_0001>
module attributes {stable_mosaic.version = 11 : i64} {
  func.func @reinforce_kernel(%arg0: i32, %arg1: memref<16x8xbf16, #tpu.memory_space<vmem>>, %arg2: memref<8x512xbf16, #tpu.memory_space<vmem>>, %arg3: memref<1x512xbf16, #tpu.memory_space<vmem>>, %arg4: memref<512x256xbf16, #tpu.memory_space<vmem>>, %arg5: memref<1x256xbf16, #tpu.memory_space<vmem>>, %arg6: memref<256x128xbf16, #tpu.memory_space<vmem>>, %arg7: memref<1x128xbf16, #tpu.memory_space<vmem>>, %arg8: memref<128x128xbf16, #tpu.memory_space<vmem>>, %arg9: memref<1x128xf32, #tpu.memory_space<vmem>>, %arg10: memref<16x128xf32, #tpu.memory_space<vmem>>) attributes {dimension_semantics = [#tpu.dimension_semantics<parallel>], iteration_bounds = array<i64: 1>, scalar_prefetch = 0 : i64, scratch_operands = 0 : i64, tpu.core_type = #tpu.core_type<tc>, window_params = [{transform_indices = @transform_0, window_bounds = array<i64: 16, 8>}, {pipeline_mode = #tpu.pipeline_mode<synchronous>, transform_indices = @transform_1, window_bounds = array<i64: 8, 512>}, {pipeline_mode = #tpu.pipeline_mode<synchronous>, transform_indices = @transform_2, window_bounds = array<i64: 1, 512>}, {pipeline_mode = #tpu.pipeline_mode<synchronous>, transform_indices = @transform_3, window_bounds = array<i64: 512, 256>}, {pipeline_mode = #tpu.pipeline_mode<synchronous>, transform_indices = @transform_4, window_bounds = array<i64: 1, 256>}, {pipeline_mode = #tpu.pipeline_mode<synchronous>, transform_indices = @transform_5, window_bounds = array<i64: 256, 128>}, {pipeline_mode = #tpu.pipeline_mode<synchronous>, transform_indices = @transform_6, window_bounds = array<i64: 1, 128>}, {pipeline_mode = #tpu.pipeline_mode<synchronous>, transform_indices = @transform_7, window_bounds = array<i64: 128, 128>}, {pipeline_mode = #tpu.pipeline_mode<synchronous>, transform_indices = @transform_8, window_bounds = array<i64: 1, 128>}, {transform_indices = @transform_9, window_bounds = array<i64: 16, 128>}]} {
    %c0 = arith.constant 0 : index
    %c0_0 = arith.constant 0 : index
    %0 = vector.load %arg1[%c0, %c0_0] : memref<16x8xbf16, #tpu.memory_space<vmem>>, vector<16x8xbf16>
    %c0_1 = arith.constant 0 : index
    %c0_2 = arith.constant 0 : index
    %1 = vector.load %arg2[%c0_1, %c0_2] : memref<8x512xbf16, #tpu.memory_space<vmem>>, vector<8x512xbf16>
    %cst = arith.constant dense<0.000000e+00> : vector<16x512xf32>
    %2 = tpu.matmul %0, %1, %cst {dimension_numbers = #tpu.dot_dimension_numbers<[1], [0], [0], [1], [0, 0, 1, 1], [], []>} : vector<16x8xbf16>, vector<8x512xbf16>, vector<16x512xf32> -> vector<16x512xf32>
    %3 = arith.truncf %2 : vector<16x512xf32> to vector<16x512xbf16>
    %c0_3 = arith.constant 0 : index
    %c0_4 = arith.constant 0 : index
    %4 = vector.load %arg3[%c0_3, %c0_4] : memref<1x512xbf16, #tpu.memory_space<vmem>>, vector<1x512xbf16>
    %5 = vector.broadcast %4 : vector<1x512xbf16> to vector<16x512xbf16>
    %6 = arith.addf %3, %5 : vector<16x512xbf16>
    %cst_5 = arith.constant 0.000000e+00 : bf16
    %7 = vector.broadcast %cst_5 : bf16 to vector<16x512xbf16>
    %8 = arith.maximumf %6, %7 : vector<16x512xbf16>
    %c0_6 = arith.constant 0 : index
    %c0_7 = arith.constant 0 : index
    %9 = vector.load %arg4[%c0_6, %c0_7] : memref<512x256xbf16, #tpu.memory_space<vmem>>, vector<512x256xbf16>
    %cst_8 = arith.constant dense<0.000000e+00> : vector<16x256xf32>
    %10 = tpu.matmul %8, %9, %cst_8 {dimension_numbers = #tpu.dot_dimension_numbers<[1], [0], [0], [1], [0, 0, 1, 1], [], []>} : vector<16x512xbf16>, vector<512x256xbf16>, vector<16x256xf32> -> vector<16x256xf32>
    %11 = arith.truncf %10 : vector<16x256xf32> to vector<16x256xbf16>
    %c0_9 = arith.constant 0 : index
    %c0_10 = arith.constant 0 : index
    %12 = vector.load %arg5[%c0_9, %c0_10] : memref<1x256xbf16, #tpu.memory_space<vmem>>, vector<1x256xbf16>
    %13 = vector.broadcast %12 : vector<1x256xbf16> to vector<16x256xbf16>
    %14 = arith.addf %11, %13 : vector<16x256xbf16>
    %cst_11 = arith.constant 0.000000e+00 : bf16
    %15 = vector.broadcast %cst_11 : bf16 to vector<16x256xbf16>
    %16 = arith.maximumf %14, %15 : vector<16x256xbf16>
    %c0_12 = arith.constant 0 : index
    %c0_13 = arith.constant 0 : index
    %17 = vector.load %arg6[%c0_12, %c0_13] : memref<256x128xbf16, #tpu.memory_space<vmem>>, vector<256x128xbf16>
    %cst_14 = arith.constant dense<0.000000e+00> : vector<16x128xf32>
    %18 = tpu.matmul %16, %17, %cst_14 {dimension_numbers = #tpu.dot_dimension_numbers<[1], [0], [0], [1], [0, 0, 1, 1], [], []>} : vector<16x256xbf16>, vector<256x128xbf16>, vector<16x128xf32> -> vector<16x128xf32>
    %19 = arith.truncf %18 : vector<16x128xf32> to vector<16x128xbf16>
    %c0_15 = arith.constant 0 : index
    %c0_16 = arith.constant 0 : index
    %20 = vector.load %arg7[%c0_15, %c0_16] : memref<1x128xbf16, #tpu.memory_space<vmem>>, vector<1x128xbf16>
    %21 = vector.broadcast %20 : vector<1x128xbf16> to vector<16x128xbf16>
    %22 = arith.addf %19, %21 : vector<16x128xbf16>
    %cst_17 = arith.constant 0.000000e+00 : bf16
    %23 = vector.broadcast %cst_17 : bf16 to vector<16x128xbf16>
    %24 = arith.maximumf %22, %23 : vector<16x128xbf16>
    %c0_18 = arith.constant 0 : index
    %c0_19 = arith.constant 0 : index
    %25 = vector.load %arg8[%c0_18, %c0_19] : memref<128x128xbf16, #tpu.memory_space<vmem>>, vector<128x128xbf16>
    %cst_20 = arith.constant dense<0.000000e+00> : vector<16x128xf32>
    %26 = tpu.matmul %24, %25, %cst_20 {dimension_numbers = #tpu.dot_dimension_numbers<[1], [0], [0], [1], [0, 0, 1, 1], [], []>} : vector<16x128xbf16>, vector<128x128xbf16>, vector<16x128xf32> -> vector<16x128xf32>
    %c0_21 = arith.constant 0 : index
    %c0_22 = arith.constant 0 : index
    %27 = vector.load %arg9[%c0_21, %c0_22] : memref<1x128xf32, #tpu.memory_space<vmem>>, vector<1x128xf32>
    %28 = vector.broadcast %27 : vector<1x128xf32> to vector<16x128xf32>
    %29 = arith.addf %26, %28 : vector<16x128xf32>
    %cst_23 = arith.constant 0.000000e+00 : f32
    %30 = vector.broadcast %cst_23 : f32 to vector<16x128xf32>
    %31 = arith.subf %30, %29 : vector<16x128xf32>
    %32 = math.exp %31 : vector<16x128xf32>
    %cst_24 = arith.constant 1.000000e+00 : f32
    %33 = vector.broadcast %cst_24 : f32 to vector<16x128xf32>
    %34 = arith.addf %33, %32 : vector<16x128xf32>
    %cst_25 = arith.constant 1.000000e+00 : f32
    %35 = vector.broadcast %cst_25 : f32 to vector<16x128xf32>
    %36 = arith.divf %35, %34 : vector<16x128xf32>
    %c0_26 = arith.constant 0 : index
    %c0_27 = arith.constant 0 : index
    %37 = vector.load %arg10[%c0_26, %c0_27] : memref<16x128xf32, #tpu.memory_space<vmem>>, vector<16x128xf32>
    tpu.vector_store %arg10[%c0_26, %c0_27], %36 {strides = array<i32>} : memref<16x128xf32, #tpu.memory_space<vmem>>, vector<16x128xf32>,
    return
  }
  func.func @transform_0(%arg0: i32) -> (i32, i32) {
    %c0_i32 = arith.constant 0 : i32
    %c0_i32_0 = arith.constant 0 : i32
    return %arg0, %c0_i32 : i32, i32
  }
  func.func @transform_1(%arg0: i32) -> (i32, i32) {
    %c0_i32 = arith.constant 0 : i32
    %c0_i32_0 = arith.constant 0 : i32
    %c0_i32_1 = arith.constant 0 : i32
    return %c0_i32, %c0_i32_0 : i32, i32
  }
  func.func @transform_2(%arg0: i32) -> (i32, i32) {
    %c0_i32 = arith.constant 0 : i32
    %c0_i32_0 = arith.constant 0 : i32
    %c0_i32_1 = arith.constant 0 : i32
    return %c0_i32, %c0_i32_0 : i32, i32
  }
  func.func @transform_3(%arg0: i32) -> (i32, i32) {
    %c0_i32 = arith.constant 0 : i32
    %c0_i32_0 = arith.constant 0 : i32
    %c0_i32_1 = arith.constant 0 : i32
    return %c0_i32, %c0_i32_0 : i32, i32
  }
  func.func @transform_4(%arg0: i32) -> (i32, i32) {
    %c0_i32 = arith.constant 0 : i32
    %c0_i32_0 = arith.constant 0 : i32
    %c0_i32_1 = arith.constant 0 : i32
    return %c0_i32, %c0_i32_0 : i32, i32
  }
  func.func @transform_5(%arg0: i32) -> (i32, i32) {
    %c0_i32 = arith.constant 0 : i32
    %c0_i32_0 = arith.constant 0 : i32
    %c0_i32_1 = arith.constant 0 : i32
    return %c0_i32, %c0_i32_0 : i32, i32
  }
  func.func @transform_6(%arg0: i32) -> (i32, i32) {
    %c0_i32 = arith.constant 0 : i32
    %c0_i32_0 = arith.constant 0 : i32
    %c0_i32_1 = arith.constant 0 : i32
    return %c0_i32, %c0_i32_0 : i32, i32
  }
  func.func @transform_7(%arg0: i32) -> (i32, i32) {
    %c0_i32 = arith.constant 0 : i32
    %c0_i32_0 = arith.constant 0 : i32
    %c0_i32_1 = arith.constant 0 : i32
    return %c0_i32, %c0_i32_0 : i32, i32
  }
  func.func @transform_8(%arg0: i32) -> (i32, i32) {
    %c0_i32 = arith.constant 0 : i32
    %c0_i32_0 = arith.constant 0 : i32
    %c0_i32_1 = arith.constant 0 : i32
    return %c0_i32, %c0_i32_0 : i32, i32
  }
  func.func @transform_9(%arg0: i32) -> (i32, i32) {
    %c0_i32 = arith.constant 0 : i32
    %c0_i32_0 = arith.constant 0 : i32
    return %arg0, %c0_i32 : i32, i32
  }
}

</mosaic_0001>

<llo_original>
// kernel: reinforce_forward.1
$region0: #{reinforce_forward.1}
  #allocation0 [shape = 'u32[]', space=smem, size = 0x4, offset = 0x4, fixed_abs, tag = 'smem constant byte address 0x4 - core index']
  #allocation1 [shape = 'u32[72,128]{1,0:T(1,128)}', space=vmem, size = 0x9000, scoped, tag = 'internal scratch']
  %s0 = inlined_call_operand.vmem [shape: bf16[16,8], index: 0, kind: input, shape index: {}]
  %s1 = inlined_call_operand.hbm [shape: bf16[8,512], index: 1, kind: input, shape index: {}]
  %s2 = inlined_call_operand.vmem [shape: bf16[1,512], index: 2, kind: input, shape index: {}]
  %s3 = inlined_call_operand.hbm [shape: bf16[512,256], index: 3, kind: input, shape index: {}]
  %s4 = inlined_call_operand.vmem [shape: bf16[1,256], index: 4, kind: input, shape index: {}]
  %s5 = inlined_call_operand.hbm [shape: bf16[256,128], index: 5, kind: input, shape index: {}]
  %s6 = inlined_call_operand.vmem [shape: bf16[1,128], index: 6, kind: input, shape index: {}]
  %s7 = inlined_call_operand.hbm [shape: bf16[128,128], index: 7, kind: input, shape index: {}]
  %s8 = inlined_call_operand.vmem [shape: f32[1,128], index: 8, kind: input, shape index: {}]
  %s9 = inlined_call_operand.vmem [shape: f32[16,128], index: 9, kind: output, shape index: {}]
  %s10 = sld [smem:[#allocation0]]
  $region62: #{reinforce_forward.1} parent=0
    _
  %s12 = ssub.s32 1, %s10
  %s13 = scalar_select 0, %s12, %s10
  $region1: #{reinforce_forward.1} parent=0
    #allocation2 [shape = 'u8[8192]{0}', space=vmem, size = 0x2000, scoped, tag = 'input window, operand 1, single buffered']
    #allocation3 [shape = 's32[1]{0}', space=sflag, size = 0x4, scoped, tag = 'scoped memory for reinforce_forward.1']
    #allocation4 [shape = 'u8[262144]{0}', space=vmem, size = 0x40000, scoped, tag = 'input window, operand 3, single buffered']
    #allocation5 [shape = 's32[1]{0}', space=sflag, size = 0x4, scoped, tag = 'scoped memory for reinforce_forward.1']
    #allocation6 [shape = 'u8[65536]{0}', space=vmem, size = 0x10000, scoped, tag = 'input window, operand 5, single buffered']
    #allocation7 [shape = 'u8[32768]{0}', space=vmem, size = 0x8000, scoped, tag = 'input window, operand 7, single buffered']
    #allocation8 [shape = 's32[1]{0}', space=sflag, size = 0x4, scoped, tag = 'scoped memory for reinforce_forward.1']
    %14 = vsyncpa [#allocation3], 0
    %15 = vsyncpa [#allocation5], 0
    %16 = vsyncpa [#allocation8], 0
    // Predicated region
    $region2: #{reinforce_forward.1} parent=1 // pred_check
      _
    $region3: #{reinforce_forward.1} parent=1 // pred_check_branch
      %18 = sbr.rel (0) target = $region5
    $region4: #{reinforce_forward.1} parent=1 // pred_region
      _
    $region5: #{reinforce_forward.1} parent=1 // pred_fallthru
      _
    // Predicated region
    $region6: #{reinforce_forward.1} parent=1 // pred_check
      _
    $region7: #{reinforce_forward.1} parent=1 // pred_check_branch
      %20 = sbr.rel (0) target = $region9
    $region8: #{reinforce_forward.1} parent=1 // pred_region
      %22 = vsyncadd [#allocation3], 0
      %s24 = sshll.u32 %s1, 4
      %s25 = int_to_ptr.hbm [resolvable:$true] %s24
      %s26 = sshll.u32 [#allocation2], 4
      %s27 = int_to_ptr.vmem [resolvable:$true] %s26
      %29 = dma.hbm_to_vmem [thread:$0]  %s25, 256, %s27, [#allocation3]
    $region9: #{reinforce_forward.1} parent=1 // pred_fallthru
      _
    // Predicated region
    $region10: #{reinforce_forward.1} parent=1 // pred_check
      _
    $region11: #{reinforce_forward.1} parent=1 // pred_check_branch
      %31 = sbr.rel (0) target = $region13
    $region12: #{reinforce_forward.1} parent=1 // pred_region
      _
    $region13: #{reinforce_forward.1} parent=1 // pred_fallthru
      _
    // Predicated region
    $region14: #{reinforce_forward.1} parent=1 // pred_check
      _
    $region15: #{reinforce_forward.1} parent=1 // pred_check_branch
      %33 = sbr.rel (0) target = $region17
    $region16: #{reinforce_forward.1} parent=1 // pred_region
      %35 = vsyncadd [#allocation5], 0
      %s36 = sshll.u32 %s3, 4
      %s37 = int_to_ptr.hbm [resolvable:$true] %s36
      %s38 = sshll.u32 [#allocation4], 4
      %s39 = int_to_ptr.vmem [resolvable:$true] %s38
      %44 = dma.hbm_to_vmem [thread:$0]  %s37, 8192, %s39, [#allocation5], 128, 128, 8
    $region17: #{reinforce_forward.1} parent=1 // pred_fallthru
      _
    // Predicated region
    $region18: #{reinforce_forward.1} parent=1 // pred_check
      _
    $region19: #{reinforce_forward.1} parent=1 // pred_check_branch
      %46 = sbr.rel (0) target = $region21
    $region20: #{reinforce_forward.1} parent=1 // pred_region
      _
    $region21: #{reinforce_forward.1} parent=1 // pred_fallthru
      _
    // Predicated region
    $region22: #{reinforce_forward.1} parent=1 // pred_check
      _
    $region23: #{reinforce_forward.1} parent=1 // pred_check_branch
      %48 = sbr.rel (0) target = $region25
    $region24: #{reinforce_forward.1} parent=1 // pred_region
      %50 = vsyncadd [#allocation5], 0
      %s51 = sshll.u32 %s5, 4
      %s52 = int_to_ptr.hbm [resolvable:$true] %s51
      %s53 = sshll.u32 [#allocation6], 4
      %s54 = int_to_ptr.vmem [resolvable:$true] %s53
      %59 = dma.hbm_to_vmem [thread:$0]  %s52, 2048, %s54, [#allocation5], 64, 64, 4
    $region25: #{reinforce_forward.1} parent=1 // pred_fallthru
      _
    // Predicated region
    $region26: #{reinforce_forward.1} parent=1 // pred_check
      _
    $region27: #{reinforce_forward.1} parent=1 // pred_check_branch
      %61 = sbr.rel (0) target = $region29
    $region28: #{reinforce_forward.1} parent=1 // pred_region
      _
    $region29: #{reinforce_forward.1} parent=1 // pred_fallthru
      _
    // Predicated region
    $region30: #{reinforce_forward.1} parent=1 // pred_check
      _
    $region31: #{reinforce_forward.1} parent=1 // pred_check_branch
      %63 = sbr.rel (0) target = $region33
    $region32: #{reinforce_forward.1} parent=1 // pred_region
      %65 = vsyncadd [#allocation8], 0
      %s66 = sshll.u32 %s7, 4
      %s67 = int_to_ptr.hbm [resolvable:$true] %s66
      %s68 = sshll.u32 [#allocation7], 4
      %s69 = int_to_ptr.vmem [resolvable:$true] %s68
      %74 = dma.hbm_to_vmem [thread:$0]  %s67, 1024, %s69, [#allocation8], 64, 64, 4
    $region33: #{reinforce_forward.1} parent=1 // pred_fallthru
      _
    // Predicated region
    $region34: #{reinforce_forward.1} parent=1 // pred_check
      _
    $region35: #{reinforce_forward.1} parent=1 // pred_check_branch
      %76 = sbr.rel (0) target = $region37
    $region36: #{reinforce_forward.1} parent=1 // pred_region
      _
    $region37: #{reinforce_forward.1} parent=1 // pred_fallthru
      _
    // Predicated region
    $region38: #{reinforce_forward.1} parent=1 // pred_check
      _
    $region39: #{reinforce_forward.1} parent=1 // pred_check_branch
      %78 = sbr.rel (0) target = $region41
    $region40: #{reinforce_forward.1} parent=1 // pred_region
      %80 = dma.done [#allocation3], 256
    $region41: #{reinforce_forward.1} parent=1 // pred_fallthru
      _
    // Predicated region
    $region42: #{reinforce_forward.1} parent=1 // pred_check
      _
    $region43: #{reinforce_forward.1} parent=1 // pred_check_branch
      %82 = sbr.rel (0) target = $region45
    $region44: #{reinforce_forward.1} parent=1 // pred_region
      %84 = dma.done [#allocation5], 8192
    $region45: #{reinforce_forward.1} parent=1 // pred_fallthru
      _
    // Predicated region
    $region46: #{reinforce_forward.1} parent=1 // pred_check
      _
    $region47: #{reinforce_forward.1} parent=1 // pred_check_branch
      %86 = sbr.rel (0) target = $region49
    $region48: #{reinforce_forward.1} parent=1 // pred_region
      %88 = dma.done [#allocation5], 2048
    $region49: #{reinforce_forward.1} parent=1 // pred_fallthru
      _
    // Predicated region
    $region50: #{reinforce_forward.1} parent=1 // pred_check
      _
    $region51: #{reinforce_forward.1} parent=1 // pred_check_branch
      %90 = sbr.rel (0) target = $region53
    $region52: #{reinforce_forward.1} parent=1 // pred_region
      %92 = dma.done [#allocation8], 1024
    $region53: #{reinforce_forward.1} parent=1 // pred_fallthru
      _
    %v94 = vld [vmem:[%s0] sm:$0xf]
    %v95 = vld [vmem:[%s0 + $0x4] sm:$0xf]
    %v96 = vld [vmem:[#allocation2] sm:$0xff]
    %v97 = vld [vmem:[#allocation2 + $0x8] sm:$0xff]
    %v100 = vunpack.c.l.b16 %v94
    %v101 = vunpack.c.l.b16 %v95
    %v102 = vpack.c.b16 %v101, %v100
    %v105 = vunpack.c.l.b16 %v96
    %v106 = vunpack.c.h.b16 %v96
    %v107 = vunpack.c.l.b16 %v97
    %v108 = vunpack.c.h.b16 %v97
    %v109 = vpack.c.b16 %v105, %v105
    %v110 = vpack.c.b16 %v106, %v106
    %v111 = vpack.c.b16 %v107, %v107
    %v112 = vpack.c.b16 %v108, %v108
    %vm113 = vcmask 64512
    %v115 = vsel %vm113, %v102, 0
    %vm117 = vcmask 1043456
    %v119 = vsel %vm117, %v109, 0
    %v122 = vsel %vm117, %v110, 0
    %v125 = vsel %vm117, %v111, 0
    %v128 = vsel %vm117, %v112, 0
    %130 = vmatpush.bf16.msra.mxu0 0
    %131 = vmatpush.bf16.msra.mxu0 0
    %132 = vmatpush.bf16.msra.mxu0 0
    %133 = vmatpush.bf16.msra.mxu0 0
    %134 = vmatpush.bf16.msra.mxu0 0
    %135 = vmatpush.bf16.msra.mxu0 0
    %136 = vmatpush.bf16.msra.mxu0 0
    %137 = vmatpush.bf16.msra.mxu0 %v119
    %138 = vmatmul.bf16.gmra.mxu0 %v115
    %v139 = vpop.f32.mrf.mxu0
    %v140 = vadd.f32 0.0, %v139
    %v141 = vpop.f32.mrf.mxu0
    %v142 = vadd.f32 0.0, %v141
    %143 = vdwg.mxu0
    %144 = vmatpush.bf16.msra.mxu0 0
    %145 = vmatpush.bf16.msra.mxu0 0
    %146 = vmatpush.bf16.msra.mxu0 0
    %147 = vmatpush.bf16.msra.mxu0 0
    %148 = vmatpush.bf16.msra.mxu0 0
    %149 = vmatpush.bf16.msra.mxu0 0
    %150 = vmatpush.bf16.msra.mxu0 0
    %151 = vmatpush.bf16.msra.mxu0 %v122
    %152 = vmatmul.bf16.gmra.mxu0 %v115
    %v153 = vpop.f32.mrf.mxu0
    %v154 = vadd.f32 0.0, %v153
    %v155 = vpop.f32.mrf.mxu0
    %v156 = vadd.f32 0.0, %v155
    %157 = vdwg.mxu0
    %158 = vmatpush.bf16.msra.mxu0 0
    %159 = vmatpush.bf16.msra.mxu0 0
    %160 = vmatpush.bf16.msra.mxu0 0
    %161 = vmatpush.bf16.msra.mxu0 0
    %162 = vmatpush.bf16.msra.mxu0 0
    %163 = vmatpush.bf16.msra.mxu0 0
    %164 = vmatpush.bf16.msra.mxu0 0
    %165 = vmatpush.bf16.msra.mxu0 %v125
    %166 = vmatmul.bf16.gmra.mxu0 %v115
    %v167 = vpop.f32.mrf.mxu0
    %v168 = vadd.f32 0.0, %v167
    %v169 = vpop.f32.mrf.mxu0
    %v170 = vadd.f32 0.0, %v169
    %171 = vdwg.mxu0
    %172 = vmatpush.bf16.msra.mxu0 0
    %173 = vmatpush.bf16.msra.mxu0 0
    %174 = vmatpush.bf16.msra.mxu0 0
    %175 = vmatpush.bf16.msra.mxu0 0
    %176 = vmatpush.bf16.msra.mxu0 0
    %177 = vmatpush.bf16.msra.mxu0 0
    %178 = vmatpush.bf16.msra.mxu0 0
    %179 = vmatpush.bf16.msra.mxu0 %v128
    %180 = vmatmul.bf16.gmra.mxu0 %v115
    %v181 = vpop.f32.mrf.mxu0
    %v182 = vadd.f32 0.0, %v181
    %v183 = vpop.f32.mrf.mxu0
    %v184 = vadd.f32 0.0, %v183
    %185 = vdwg.mxu0
    %v186 = vpack.c.bf16 %v154, %v140
    %v187 = vpack.c.bf16 %v182, %v168
    %v188 = vpack.c.bf16 %v156, %v142
    %v189 = vpack.c.bf16 %v184, %v170
    %v190 = vld [vmem:[%s2] sm:$0xf]
    %192 = vst [vmem:[#allocation1] ss:$9 sm:$0xff] %v190
    %v193 = vld [vmem:[#allocation1] sm:$0xff]
    %v194 = vld [vmem:[#allocation1 + $0x9] sm:$0xff]
    %v195 = vld [vmem:[#allocation1 + $0x12] sm:$0xff]
    %v196 = vld [vmem:[#allocation1 + $0x1b] sm:$0xff]
    %v197 = vpack.i.b16 %v193, %v193
    %v199 = vperm.slane %v197, 0
    %v200 = vpack.i.b16 %v194, %v194
    %v202 = vperm.slane %v200, 0
    %v203 = vpack.i.b16 %v195, %v195
    %v205 = vperm.slane %v203, 0
    %v206 = vpack.i.b16 %v196, %v196
    %v208 = vperm.slane %v206, 0
    %v209 = vunpack.c.l.bf16 %v186
    %v210 = vunpack.c.h.bf16 %v186
    %v211 = vunpack.c.l.bf16 %v187
    %v212 = vunpack.c.h.bf16 %v187
    %v213 = vunpack.c.l.bf16 %v188
    %v214 = vunpack.c.h.bf16 %v188
    %v215 = vunpack.c.l.bf16 %v189
    %v216 = vunpack.c.h.bf16 %v189
    %v217 = vunpack.c.l.bf16 %v199
    %v218 = vunpack.c.l.bf16 %v202
    %v219 = vunpack.c.l.bf16 %v205
    %v220 = vunpack.c.l.bf16 %v208
    %v221 = vadd.f32 %v209, %v217
    %v222 = vadd.f32 %v210, %v218
    %v223 = vadd.f32 %v211, %v219
    %v224 = vadd.f32 %v212, %v220
    %v225 = vadd.f32 %v213, %v217
    %v226 = vadd.f32 %v214, %v218
    %v227 = vadd.f32 %v215, %v219
    %v228 = vadd.f32 %v216, %v220
    %v229 = vpack.c.bf16 %v222, %v221
    %v230 = vpack.c.bf16 %v224, %v223
    %v231 = vpack.c.bf16 %v226, %v225
    %v232 = vpack.c.bf16 %v228, %v227
    %v233 = vunpack.c.l.bf16 %v229
    %v234 = vunpack.c.h.bf16 %v229
    %v235 = vunpack.c.l.bf16 %v230
    %v236 = vunpack.c.h.bf16 %v230
    %v237 = vunpack.c.l.bf16 %v231
    %v238 = vunpack.c.h.bf16 %v231
    %v239 = vunpack.c.l.bf16 %v232
    %v240 = vunpack.c.h.bf16 %v232
    %v241 = vmax.f32 %v233, 0.0
    %v242 = vmax.f32 %v234, 0.0
    %v243 = vmax.f32 %v235, 0.0
    %v244 = vmax.f32 %v236, 0.0
    %v245 = vmax.f32 %v237, 0.0
    %v246 = vmax.f32 %v238, 0.0
    %v247 = vmax.f32 %v239, 0.0
    %v248 = vmax.f32 %v240, 0.0
    %v249 = vpack.c.bf16 %v245, %v241
    %v250 = vpack.c.bf16 %v246, %v242
    %v251 = vpack.c.bf16 %v247, %v243
    %v252 = vpack.c.bf16 %v248, %v244
    %v253 = vld [vmem:[#allocation4] sm:$0xff]
    %v254 = vld [vmem:[#allocation4 + $0x8] sm:$0xff]
    %v255 = vld [vmem:[#allocation4 + $0x10] sm:$0xff]
    %v256 = vld [vmem:[#allocation4 + $0x18] sm:$0xff]
    %v257 = vld [vmem:[#allocation4 + $0x20] sm:$0xff]
    %v258 = vld [vmem:[#allocation4 + $0x28] sm:$0xff]
    %v259 = vld [vmem:[#allocation4 + $0x30] sm:$0xff]
    %v260 = vld [vmem:[#allocation4 + $0x38] sm:$0xff]
    %v261 = vld [vmem:[#allocation4 + $0x40] sm:$0xff]
    %v262 = vld [vmem:[#allocation4 + $0x48] sm:$0xff]
    %v263 = vld [vmem:[#allocation4 + $0x50] sm:$0xff]
    %v264 = vld [vmem:[#allocation4 + $0x58] sm:$0xff]
    %v265 = vld [vmem:[#allocation4 + $0x60] sm:$0xff]
    %v266 = vld [vmem:[#allocation4 + $0x68] sm:$0xff]
    %v267 = vld [vmem:[#allocation4 + $0x70] sm:$0xff]
    %v268 = vld [vmem:[#allocation4 + $0x78] sm:$0xff]
    %v269 = vld [vmem:[#allocation4 + $0x80] sm:$0xff]
    %v270 = vld [vmem:[#allocation4 + $0x88] sm:$0xff]
    %v271 = vld [vmem:[#allocation4 + $0x90] sm:$0xff]
    %v272 = vld [vmem:[#allocation4 + $0x98] sm:$0xff]
    %v273 = vld [vmem:[#allocation4 + $0xa0] sm:$0xff]
    %v274 = vld [vmem:[#allocation4 + $0xa8] sm:$0xff]
    %v275 = vld [vmem:[#allocation4 + $0xb0] sm:$0xff]
    %v276 = vld [vmem:[#allocation4 + $0xb8] sm:$0xff]
    %v277 = vld [vmem:[#allocation4 + $0xc0] sm:$0xff]
    %v278 = vld [vmem:[#allocation4 + $0xc8] sm:$0xff]
    %v279 = vld [vmem:[#allocation4 + $0xd0] sm:$0xff]
    %v280 = vld [vmem:[#allocation4 + $0xd8] sm:$0xff]
    %v281 = vld [vmem:[#allocation4 + $0xe0] sm:$0xff]
    %v282 = vld [vmem:[#allocation4 + $0xe8] sm:$0xff]
    %v283 = vld [vmem:[#allocation4 + $0xf0] sm:$0xff]
    %v284 = vld [vmem:[#allocation4 + $0xf8] sm:$0xff]
    %v285 = vld [vmem:[#allocation4 + $0x100] sm:$0xff]
    %v286 = vld [vmem:[#allocation4 + $0x108] sm:$0xff]
    %v287 = vld [vmem:[#allocation4 + $0x110] sm:$0xff]
    %v288 = vld [vmem:[#allocation4 + $0x118] sm:$0xff]
    %v289 = vld [vmem:[#allocation4 + $0x120] sm:$0xff]
    %v290 = vld [vmem:[#allocation4 + $0x128] sm:$0xff]
    %v291 = vld [vmem:[#allocation4 + $0x130] sm:$0xff]
    %v292 = vld [vmem:[#allocation4 + $0x138] sm:$0xff]
    %v293 = vld [vmem:[#allocation4 + $0x140] sm:$0xff]
    %v294 = vld [vmem:[#allocation4 + $0x148] sm:$0xff]
    %v295 = vld [vmem:[#allocation4 + $0x150] sm:$0xff]
    %v296 = vld [vmem:[#allocation4 + $0x158] sm:$0xff]
    %v297 = vld [vmem:[#allocation4 + $0x160] sm:$0xff]
    %v298 = vld [vmem:[#allocation4 + $0x168] sm:$0xff]
    %v299 = vld [vmem:[#allocation4 + $0x170] sm:$0xff]
    %v300 = vld [vmem:[#allocation4 + $0x178] sm:$0xff]
    %v301 = vld [vmem:[#allocation4 + $0x180] sm:$0xff]
    %v302 = vld [vmem:[#allocation4 + $0x188] sm:$0xff]
    %v303 = vld [vmem:[#allocation4 + $0x190] sm:$0xff]
    %v304 = vld [vmem:[#allocation4 + $0x198] sm:$0xff]
    %v305 = vld [vmem:[#allocation4 + $0x1a0] sm:$0xff]
    %v306 = vld [vmem:[#allocation4 + $0x1a8] sm:$0xff]
    %v307 = vld [vmem:[#allocation4 + $0x1b0] sm:$0xff]
    %v308 = vld [vmem:[#allocation4 + $0x1b8] sm:$0xff]
    %v309 = vld [vmem:[#allocation4 + $0x1c0] sm:$0xff]
    %v310 = vld [vmem:[#allocation4 + $0x1c8] sm:$0xff]
    %v311 = vld [vmem:[#allocation4 + $0x1d0] sm:$0xff]
    %v312 = vld [vmem:[#allocation4 + $0x1d8] sm:$0xff]
    %v313 = vld [vmem:[#allocation4 + $0x1e0] sm:$0xff]
    %v314 = vld [vmem:[#allocation4 + $0x1e8] sm:$0xff]
    %v315 = vld [vmem:[#allocation4 + $0x1f0] sm:$0xff]
    %v316 = vld [vmem:[#allocation4 + $0x1f8] sm:$0xff]
    %v381 = vunpack.c.l.b16 %v253
    %v382 = vunpack.c.h.b16 %v253
    %v383 = vunpack.c.l.b16 %v254
    %v384 = vunpack.c.h.b16 %v254
    %v385 = vunpack.c.l.b16 %v255
    %v386 = vunpack.c.h.b16 %v255
    %v387 = vunpack.c.l.b16 %v256
    %v388 = vunpack.c.h.b16 %v256
    %v389 = vunpack.c.l.b16 %v257
    %v390 = vunpack.c.h.b16 %v257
    %v391 = vunpack.c.l.b16 %v258
    %v392 = vunpack.c.h.b16 %v258
    %v393 = vunpack.c.l.b16 %v259
    %v394 = vunpack.c.h.b16 %v259
    %v395 = vunpack.c.l.b16 %v260
    %v396 = vunpack.c.h.b16 %v260
    %v397 = vunpack.c.l.b16 %v261
    %v398 = vunpack.c.h.b16 %v261
    %v399 = vunpack.c.l.b16 %v262
    %v400 = vunpack.c.h.b16 %v262
    %v401 = vunpack.c.l.b16 %v263
    %v402 = vunpack.c.h.b16 %v263
    %v403 = vunpack.c.l.b16 %v264
    %v404 = vunpack.c.h.b16 %v264
    %v405 = vunpack.c.l.b16 %v265
    %v406 = vunpack.c.h.b16 %v265
    %v407 = vunpack.c.l.b16 %v266
    %v408 = vunpack.c.h.b16 %v266
    %v409 = vunpack.c.l.b16 %v267
    %v410 = vunpack.c.h.b16 %v267
    %v411 = vunpack.c.l.b16 %v268
    %v412 = vunpack.c.h.b16 %v268
    %v413 = vunpack.c.l.b16 %v269
    %v414 = vunpack.c.h.b16 %v269
    %v415 = vunpack.c.l.b16 %v270
    %v416 = vunpack.c.h.b16 %v270
    %v417 = vunpack.c.l.b16 %v271
    %v418 = vunpack.c.h.b16 %v271
    %v419 = vunpack.c.l.b16 %v272
    %v420 = vunpack.c.h.b16 %v272
    %v421 = vunpack.c.l.b16 %v273
    %v422 = vunpack.c.h.b16 %v273
    %v423 = vunpack.c.l.b16 %v274
    %v424 = vunpack.c.h.b16 %v274
    %v425 = vunpack.c.l.b16 %v275
    %v426 = vunpack.c.h.b16 %v275
    %v427 = vunpack.c.l.b16 %v276
    %v428 = vunpack.c.h.b16 %v276
    %v429 = vunpack.c.l.b16 %v277
    %v430 = vunpack.c.h.b16 %v277
    %v431 = vunpack.c.l.b16 %v278
    %v432 = vunpack.c.h.b16 %v278
    %v433 = vunpack.c.l.b16 %v279
    %v434 = vunpack.c.h.b16 %v279
    %v435 = vunpack.c.l.b16 %v280
    %v436 = vunpack.c.h.b16 %v280
    %v437 = vunpack.c.l.b16 %v281
    %v438 = vunpack.c.h.b16 %v281
    %v439 = vunpack.c.l.b16 %v282
    %v440 = vunpack.c.h.b16 %v282
    %v441 = vunpack.c.l.b16 %v283
    %v442 = vunpack.c.h.b16 %v283
    %v443 = vunpack.c.l.b16 %v284
    %v444 = vunpack.c.h.b16 %v284
    %v445 = vunpack.c.l.b16 %v285
    %v446 = vunpack.c.h.b16 %v285
    %v447 = vunpack.c.l.b16 %v286
    %v448 = vunpack.c.h.b16 %v286
    %v449 = vunpack.c.l.b16 %v287
    %v450 = vunpack.c.h.b16 %v287
    %v451 = vunpack.c.l.b16 %v288
    %v452 = vunpack.c.h.b16 %v288
    %v453 = vunpack.c.l.b16 %v289
    %v454 = vunpack.c.h.b16 %v289
    %v455 = vunpack.c.l.b16 %v290
    %v456 = vunpack.c.h.b16 %v290
    %v457 = vunpack.c.l.b16 %v291
    %v458 = vunpack.c.h.b16 %v291
    %v459 = vunpack.c.l.b16 %v292
    %v460 = vunpack.c.h.b16 %v292
    %v461 = vunpack.c.l.b16 %v293
    %v462 = vunpack.c.h.b16 %v293
    %v463 = vunpack.c.l.b16 %v294
    %v464 = vunpack.c.h.b16 %v294
    %v465 = vunpack.c.l.b16 %v295
    %v466 = vunpack.c.h.b16 %v295
    %v467 = vunpack.c.l.b16 %v296
    %v468 = vunpack.c.h.b16 %v296
    %v469 = vunpack.c.l.b16 %v297
    %v470 = vunpack.c.h.b16 %v297
    %v471 = vunpack.c.l.b16 %v298
    %v472 = vunpack.c.h.b16 %v298
    %v473 = vunpack.c.l.b16 %v299
    %v474 = vunpack.c.h.b16 %v299
    %v475 = vunpack.c.l.b16 %v300
    %v476 = vunpack.c.h.b16 %v300
    %v477 = vunpack.c.l.b16 %v301
    %v478 = vunpack.c.h.b16 %v301
    %v479 = vunpack.c.l.b16 %v302
    %v480 = vunpack.c.h.b16 %v302
    %v481 = vunpack.c.l.b16 %v303
    %v482 = vunpack.c.h.b16 %v303
    %v483 = vunpack.c.l.b16 %v304
    %v484 = vunpack.c.h.b16 %v304
    %v485 = vunpack.c.l.b16 %v305
    %v486 = vunpack.c.h.b16 %v305
    %v487 = vunpack.c.l.b16 %v306
    %v488 = vunpack.c.h.b16 %v306
    %v489 = vunpack.c.l.b16 %v307
    %v490 = vunpack.c.h.b16 %v307
    %v491 = vunpack.c.l.b16 %v308
    %v492 = vunpack.c.h.b16 %v308
    %v493 = vunpack.c.l.b16 %v309
    %v494 = vunpack.c.h.b16 %v309
    %v495 = vunpack.c.l.b16 %v310
    %v496 = vunpack.c.h.b16 %v310
    %v497 = vunpack.c.l.b16 %v311
    %v498 = vunpack.c.h.b16 %v311
    %v499 = vunpack.c.l.b16 %v312
    %v500 = vunpack.c.h.b16 %v312
    %v501 = vunpack.c.l.b16 %v313
    %v502 = vunpack.c.h.b16 %v313
    %v503 = vunpack.c.l.b16 %v314
    %v504 = vunpack.c.h.b16 %v314
    %v505 = vunpack.c.l.b16 %v315
    %v506 = vunpack.c.h.b16 %v315
    %v507 = vunpack.c.l.b16 %v316
    %v508 = vunpack.c.h.b16 %v316
    %v509 = vpack.c.b16 %v383, %v381
    %v510 = vpack.c.b16 %v384, %v382
    %v511 = vpack.c.b16 %v387, %v385
    %v512 = vpack.c.b16 %v388, %v386
    %v513 = vpack.c.b16 %v391, %v389
    %v514 = vpack.c.b16 %v392, %v390
    %v515 = vpack.c.b16 %v395, %v393
    %v516 = vpack.c.b16 %v396, %v394
    %v517 = vpack.c.b16 %v399, %v397
    %v518 = vpack.c.b16 %v400, %v398
    %v519 = vpack.c.b16 %v403, %v401
    %v520 = vpack.c.b16 %v404, %v402
    %v521 = vpack.c.b16 %v407, %v405
    %v522 = vpack.c.b16 %v408, %v406
    %v523 = vpack.c.b16 %v411, %v409
    %v524 = vpack.c.b16 %v412, %v410
    %v525 = vpack.c.b16 %v415, %v413
    %v526 = vpack.c.b16 %v416, %v414
    %v527 = vpack.c.b16 %v419, %v417
    %v528 = vpack.c.b16 %v420, %v418
    %v529 = vpack.c.b16 %v423, %v421
    %v530 = vpack.c.b16 %v424, %v422
    %v531 = vpack.c.b16 %v427, %v425
    %v532 = vpack.c.b16 %v428, %v426
    %v533 = vpack.c.b16 %v431, %v429
    %v534 = vpack.c.b16 %v432, %v430
    %v535 = vpack.c.b16 %v435, %v433
    %v536 = vpack.c.b16 %v436, %v434
    %v537 = vpack.c.b16 %v439, %v437
    %v538 = vpack.c.b16 %v440, %v438
    %v539 = vpack.c.b16 %v443, %v441
    %v540 = vpack.c.b16 %v444, %v442
    %v541 = vpack.c.b16 %v447, %v445
    %v542 = vpack.c.b16 %v448, %v446
    %v543 = vpack.c.b16 %v451, %v449
    %v544 = vpack.c.b16 %v452, %v450
    %v545 = vpack.c.b16 %v455, %v453
    %v546 = vpack.c.b16 %v456, %v454
    %v547 = vpack.c.b16 %v459, %v457
    %v548 = vpack.c.b16 %v460, %v458
    %v549 = vpack.c.b16 %v463, %v461
    %v550 = vpack.c.b16 %v464, %v462
    %v551 = vpack.c.b16 %v467, %v465
    %v552 = vpack.c.b16 %v468, %v466
    %v553 = vpack.c.b16 %v471, %v469
    %v554 = vpack.c.b16 %v472, %v470
    %v555 = vpack.c.b16 %v475, %v473
    %v556 = vpack.c.b16 %v476, %v474
    %v557 = vpack.c.b16 %v479, %v477
    %v558 = vpack.c.b16 %v480, %v478
    %v559 = vpack.c.b16 %v483, %v481
    %v560 = vpack.c.b16 %v484, %v482
    %v561 = vpack.c.b16 %v487, %v485
    %v562 = vpack.c.b16 %v488, %v486
    %v563 = vpack.c.b16 %v491, %v489
    %v564 = vpack.c.b16 %v492, %v490
    %v565 = vpack.c.b16 %v495, %v493
    %v566 = vpack.c.b16 %v496, %v494
    %v567 = vpack.c.b16 %v499, %v497
    %v568 = vpack.c.b16 %v500, %v498
    %v569 = vpack.c.b16 %v503, %v501
    %v570 = vpack.c.b16 %v504, %v502
    %v571 = vpack.c.b16 %v507, %v505
    %v572 = vpack.c.b16 %v508, %v506
    %637 = vmatpush.bf16.msra.mxu0 %v523
    %638 = vmatpush.bf16.msra.mxu0 %v521
    %639 = vmatpush.bf16.msra.mxu0 %v519
    %640 = vmatpush.bf16.msra.mxu0 %v517
    %641 = vmatpush.bf16.msra.mxu0 %v515
    %642 = vmatpush.bf16.msra.mxu0 %v513
    %643 = vmatpush.bf16.msra.mxu0 %v511
    %644 = vmatpush.bf16.msra.mxu0 %v509
    %645 = vmatmul.bf16.gmra.mxu0 %v249
    %v646 = vpop.f32.mrf.mxu0
    %v647 = vadd.f32 0.0, %v646
    %v648 = vpop.f32.mrf.mxu0
    %v649 = vadd.f32 0.0, %v648
    %650 = vdwg.mxu0
    %651 = vmatpush.bf16.msra.mxu0 %v539
    %652 = vmatpush.bf16.msra.mxu0 %v537
    %653 = vmatpush.bf16.msra.mxu0 %v535
    %654 = vmatpush.bf16.msra.mxu0 %v533
    %655 = vmatpush.bf16.msra.mxu0 %v531
    %656 = vmatpush.bf16.msra.mxu0 %v529
    %657 = vmatpush.bf16.msra.mxu0 %v527
    %658 = vmatpush.bf16.msra.mxu0 %v525
    %659 = vmatmul.bf16.gmra.mxu0 %v250
    %v660 = vpop.f32.mrf.mxu0
    %v661 = vadd.f32 %v647, %v660
    %v662 = vpop.f32.mrf.mxu0
    %v663 = vadd.f32 %v649, %v662
    %664 = vdwg.mxu0
    %665 = vmatpush.bf16.msra.mxu0 %v555
    %666 = vmatpush.bf16.msra.mxu0 %v553
    %667 = vmatpush.bf16.msra.mxu0 %v551
    %668 = vmatpush.bf16.msra.mxu0 %v549
    %669 = vmatpush.bf16.msra.mxu0 %v547
    %670 = vmatpush.bf16.msra.mxu0 %v545
    %671 = vmatpush.bf16.msra.mxu0 %v543
    %672 = vmatpush.bf16.msra.mxu0 %v541
    %673 = vmatmul.bf16.gmra.mxu0 %v251
    %v674 = vpop.f32.mrf.mxu0
    %v675 = vadd.f32 %v661, %v674
    %v676 = vpop.f32.mrf.mxu0
    %v677 = vadd.f32 %v663, %v676
    %678 = vdwg.mxu0
    %679 = vmatpush.bf16.msra.mxu0 %v571
    %680 = vmatpush.bf16.msra.mxu0 %v569
    %681 = vmatpush.bf16.msra.mxu0 %v567
    %682 = vmatpush.bf16.msra.mxu0 %v565
    %683 = vmatpush.bf16.msra.mxu0 %v563
    %684 = vmatpush.bf16.msra.mxu0 %v561
    %685 = vmatpush.bf16.msra.mxu0 %v559
    %686 = vmatpush.bf16.msra.mxu0 %v557
    %687 = vmatmul.bf16.gmra.mxu0 %v252
    %v688 = vpop.f32.mrf.mxu0
    %v689 = vadd.f32 %v675, %v688
    %v690 = vpop.f32.mrf.mxu0
    %v691 = vadd.f32 %v677, %v690
    %692 = vdwg.mxu0
    %693 = vmatpush.bf16.msra.mxu0 %v524
    %694 = vmatpush.bf16.msra.mxu0 %v522
    %695 = vmatpush.bf16.msra.mxu0 %v520
    %696 = vmatpush.bf16.msra.mxu0 %v518
    %697 = vmatpush.bf16.msra.mxu0 %v516
    %698 = vmatpush.bf16.msra.mxu0 %v514
    %699 = vmatpush.bf16.msra.mxu0 %v512
    %700 = vmatpush.bf16.msra.mxu0 %v510
    %701 = vmatmul.bf16.gmra.mxu0 %v249
    %v702 = vpop.f32.mrf.mxu0
    %v703 = vadd.f32 0.0, %v702
    %v704 = vpop.f32.mrf.mxu0
    %v705 = vadd.f32 0.0, %v704
    %706 = vdwg.mxu0
    %707 = vmatpush.bf16.msra.mxu0 %v540
    %708 = vmatpush.bf16.msra.mxu0 %v538
    %709 = vmatpush.bf16.msra.mxu0 %v536
    %710 = vmatpush.bf16.msra.mxu0 %v534
    %711 = vmatpush.bf16.msra.mxu0 %v532
    %712 = vmatpush.bf16.msra.mxu0 %v530
    %713 = vmatpush.bf16.msra.mxu0 %v528
    %714 = vmatpush.bf16.msra.mxu0 %v526
    %715 = vmatmul.bf16.gmra.mxu0 %v250
    %v716 = vpop.f32.mrf.mxu0
    %v717 = vadd.f32 %v703, %v716
    %v718 = vpop.f32.mrf.mxu0
    %v719 = vadd.f32 %v705, %v718
    %720 = vdwg.mxu0
    %721 = vmatpush.bf16.msra.mxu0 %v556
    %722 = vmatpush.bf16.msra.mxu0 %v554
    %723 = vmatpush.bf16.msra.mxu0 %v552
    %724 = vmatpush.bf16.msra.mxu0 %v550
    %725 = vmatpush.bf16.msra.mxu0 %v548
    %726 = vmatpush.bf16.msra.mxu0 %v546
    %727 = vmatpush.bf16.msra.mxu0 %v544
    %728 = vmatpush.bf16.msra.mxu0 %v542
    %729 = vmatmul.bf16.gmra.mxu0 %v251
    %v730 = vpop.f32.mrf.mxu0
    %v731 = vadd.f32 %v717, %v730
    %v732 = vpop.f32.mrf.mxu0
    %v733 = vadd.f32 %v719, %v732
    %734 = vdwg.mxu0
    %735 = vmatpush.bf16.msra.mxu0 %v572
    %736 = vmatpush.bf16.msra.mxu0 %v570
    %737 = vmatpush.bf16.msra.mxu0 %v568
    %738 = vmatpush.bf16.msra.mxu0 %v566
    %739 = vmatpush.bf16.msra.mxu0 %v564
    %740 = vmatpush.bf16.msra.mxu0 %v562
    %741 = vmatpush.bf16.msra.mxu0 %v560
    %742 = vmatpush.bf16.msra.mxu0 %v558
    %743 = vmatmul.bf16.gmra.mxu0 %v252
    %v744 = vpop.f32.mrf.mxu0
    %v745 = vadd.f32 %v731, %v744
    %v746 = vpop.f32.mrf.mxu0
    %v747 = vadd.f32 %v733, %v746
    %748 = vdwg.mxu0
    %v749 = vpack.c.bf16 %v745, %v689
    %v750 = vpack.c.bf16 %v747, %v691
    %v751 = vld [vmem:[%s4] sm:$0x3]
    %753 = vst [vmem:[#allocation1] ss:$9 sm:$0xff] %v751
    %v754 = vld [vmem:[#allocation1] sm:$0xff]
    %v755 = vld [vmem:[#allocation1 + $0x9] sm:$0xff]
    %v756 = vpack.i.b16 %v754, %v754
    %v758 = vperm.slane %v756, 0
    %v759 = vpack.i.b16 %v755, %v755
    %v761 = vperm.slane %v759, 0
    %v762 = vunpack.c.l.bf16 %v749
    %v763 = vunpack.c.h.bf16 %v749
    %v764 = vunpack.c.l.bf16 %v750
    %v765 = vunpack.c.h.bf16 %v750
    %v766 = vunpack.c.l.bf16 %v758
    %v767 = vunpack.c.l.bf16 %v761
    %v768 = vadd.f32 %v762, %v766
    %v769 = vadd.f32 %v763, %v767
    %v770 = vadd.f32 %v764, %v766
    %v771 = vadd.f32 %v765, %v767
    %v772 = vpack.c.bf16 %v769, %v768
    %v773 = vpack.c.bf16 %v771, %v770
    %v774 = vunpack.c.l.bf16 %v772
    %v775 = vunpack.c.h.bf16 %v772
    %v776 = vunpack.c.l.bf16 %v773
    %v777 = vunpack.c.h.bf16 %v773
    %v778 = vmax.f32 %v774, 0.0
    %v779 = vmax.f32 %v775, 0.0
    %v780 = vmax.f32 %v776, 0.0
    %v781 = vmax.f32 %v777, 0.0
    %v782 = vpack.c.bf16 %v780, %v778
    %v783 = vpack.c.bf16 %v781, %v779
    %v784 = vld [vmem:[#allocation6] sm:$0xf]
    %v785 = vld [vmem:[#allocation6 + $0x4] sm:$0xf]
    %v786 = vld [vmem:[#allocation6 + $0x8] sm:$0xf]
    %v787 = vld [vmem:[#allocation6 + $0xc] sm:$0xf]
    %v788 = vld [vmem:[#allocation6 + $0x10] sm:$0xf]
    %v789 = vld [vmem:[#allocation6 + $0x14] sm:$0xf]
    %v790 = vld [vmem:[#allocation6 + $0x18] sm:$0xf]
    %v791 = vld [vmem:[#allocation6 + $0x1c] sm:$0xf]
    %v792 = vld [vmem:[#allocation6 + $0x20] sm:$0xf]
    %v793 = vld [vmem:[#allocation6 + $0x24] sm:$0xf]
    %v794 = vld [vmem:[#allocation6 + $0x28] sm:$0xf]
    %v795 = vld [vmem:[#allocation6 + $0x2c] sm:$0xf]
    %v796 = vld [vmem:[#allocation6 + $0x30] sm:$0xf]
    %v797 = vld [vmem:[#allocation6 + $0x34] sm:$0xf]
    %v798 = vld [vmem:[#allocation6 + $0x38] sm:$0xf]
    %v799 = vld [vmem:[#allocation6 + $0x3c] sm:$0xf]
    %v800 = vld [vmem:[#allocation6 + $0x40] sm:$0xf]
    %v801 = vld [vmem:[#allocation6 + $0x44] sm:$0xf]
    %v802 = vld [vmem:[#allocation6 + $0x48] sm:$0xf]
    %v803 = vld [vmem:[#allocation6 + $0x4c] sm:$0xf]
    %v804 = vld [vmem:[#allocation6 + $0x50] sm:$0xf]
    %v805 = vld [vmem:[#allocation6 + $0x54] sm:$0xf]
    %v806 = vld [vmem:[#allocation6 + $0x58] sm:$0xf]
    %v807 = vld [vmem:[#allocation6 + $0x5c] sm:$0xf]
    %v808 = vld [vmem:[#allocation6 + $0x60] sm:$0xf]
    %v809 = vld [vmem:[#allocation6 + $0x64] sm:$0xf]
    %v810 = vld [vmem:[#allocation6 + $0x68] sm:$0xf]
    %v811 = vld [vmem:[#allocation6 + $0x6c] sm:$0xf]
    %v812 = vld [vmem:[#allocation6 + $0x70] sm:$0xf]
    %v813 = vld [vmem:[#allocation6 + $0x74] sm:$0xf]
    %v814 = vld [vmem:[#allocation6 + $0x78] sm:$0xf]
    %v815 = vld [vmem:[#allocation6 + $0x7c] sm:$0xf]
    %v848 = vunpack.c.l.b16 %v784
    %v849 = vunpack.c.l.b16 %v785
    %v850 = vunpack.c.l.b16 %v786
    %v851 = vunpack.c.l.b16 %v787
    %v852 = vunpack.c.l.b16 %v788
    %v853 = vunpack.c.l.b16 %v789
    %v854 = vunpack.c.l.b16 %v790
    %v855 = vunpack.c.l.b16 %v791
    %v856 = vunpack.c.l.b16 %v792
    %v857 = vunpack.c.l.b16 %v793
    %v858 = vunpack.c.l.b16 %v794
    %v859 = vunpack.c.l.b16 %v795
    %v860 = vunpack.c.l.b16 %v796
    %v861 = vunpack.c.l.b16 %v797
    %v862 = vunpack.c.l.b16 %v798
    %v863 = vunpack.c.l.b16 %v799
    %v864 = vunpack.c.l.b16 %v800
    %v865 = vunpack.c.l.b16 %v801
    %v866 = vunpack.c.l.b16 %v802
    %v867 = vunpack.c.l.b16 %v803
    %v868 = vunpack.c.l.b16 %v804
    %v869 = vunpack.c.l.b16 %v805
    %v870 = vunpack.c.l.b16 %v806
    %v871 = vunpack.c.l.b16 %v807
    %v872 = vunpack.c.l.b16 %v808
    %v873 = vunpack.c.l.b16 %v809
    %v874 = vunpack.c.l.b16 %v810
    %v875 = vunpack.c.l.b16 %v811
    %v876 = vunpack.c.l.b16 %v812
    %v877 = vunpack.c.l.b16 %v813
    %v878 = vunpack.c.l.b16 %v814
    %v879 = vunpack.c.l.b16 %v815
    %v880 = vpack.c.b16 %v849, %v848
    %v881 = vpack.c.b16 %v851, %v850
    %v882 = vpack.c.b16 %v853, %v852
    %v883 = vpack.c.b16 %v855, %v854
    %v884 = vpack.c.b16 %v857, %v856
    %v885 = vpack.c.b16 %v859, %v858
    %v886 = vpack.c.b16 %v861, %v860
    %v887 = vpack.c.b16 %v863, %v862
    %v888 = vpack.c.b16 %v865, %v864
    %v889 = vpack.c.b16 %v867, %v866
    %v890 = vpack.c.b16 %v869, %v868
    %v891 = vpack.c.b16 %v871, %v870
    %v892 = vpack.c.b16 %v873, %v872
    %v893 = vpack.c.b16 %v875, %v874
    %v894 = vpack.c.b16 %v877, %v876
    %v895 = vpack.c.b16 %v879, %v878
    %912 = vmatpush.bf16.msra.mxu0 %v887
    %913 = vmatpush.bf16.msra.mxu0 %v886
    %914 = vmatpush.bf16.msra.mxu0 %v885
    %915 = vmatpush.bf16.msra.mxu0 %v884
    %916 = vmatpush.bf16.msra.mxu0 %v883
    %917 = vmatpush.bf16.msra.mxu0 %v882
    %918 = vmatpush.bf16.msra.mxu0 %v881
    %919 = vmatpush.bf16.msra.mxu0 %v880
    %920 = vmatmul.bf16.gmra.mxu0 %v782
    %v921 = vpop.f32.mrf.mxu0
    %v922 = vadd.f32 0.0, %v921
    %v923 = vpop.f32.mrf.mxu0
    %v924 = vadd.f32 0.0, %v923
    %925 = vdwg.mxu0
    %926 = vmatpush.bf16.msra.mxu0 %v895
    %927 = vmatpush.bf16.msra.mxu0 %v894
    %928 = vmatpush.bf16.msra.mxu0 %v893
    %929 = vmatpush.bf16.msra.mxu0 %v892
    %930 = vmatpush.bf16.msra.mxu0 %v891
    %931 = vmatpush.bf16.msra.mxu0 %v890
    %932 = vmatpush.bf16.msra.mxu0 %v889
    %933 = vmatpush.bf16.msra.mxu0 %v888
    %934 = vmatmul.bf16.gmra.mxu0 %v783
    %v935 = vpop.f32.mrf.mxu0
    %v936 = vadd.f32 %v922, %v935
    %v937 = vpop.f32.mrf.mxu0
    %v938 = vadd.f32 %v924, %v937
    %939 = vdwg.mxu0
    %v940 = vpack.c.bf16 %v936, %v936
    %v941 = vpack.c.bf16 %v938, %v938
    %v942 = vld [vmem:[%s6] sm:$0x1]
    %v944 = vpack.i.b16 %v942, %v942
    %v946 = vperm.slane %v944, 0
    %v947 = vunpack.c.l.bf16 %v940
    %v948 = vunpack.c.l.bf16 %v941
    %v949 = vunpack.c.l.bf16 %v946
    %v950 = vadd.f32 %v947, %v949
    %v951 = vadd.f32 %v948, %v949
    %v952 = vpack.c.bf16 %v950, %v950
    %v953 = vpack.c.bf16 %v951, %v951
    %v954 = vunpack.c.l.bf16 %v952
    %v955 = vunpack.c.l.bf16 %v953
    %v956 = vmax.f32 %v954, 0.0
    %v957 = vmax.f32 %v955, 0.0
    %v958 = vpack.c.bf16 %v957, %v956
    %v959 = vld [vmem:[#allocation7] sm:$0xf]
    %v960 = vld [vmem:[#allocation7 + $0x4] sm:$0xf]
    %v961 = vld [vmem:[#allocation7 + $0x8] sm:$0xf]
    %v962 = vld [vmem:[#allocation7 + $0xc] sm:$0xf]
    %v963 = vld [vmem:[#allocation7 + $0x10] sm:$0xf]
    %v964 = vld [vmem:[#allocation7 + $0x14] sm:$0xf]
    %v965 = vld [vmem:[#allocation7 + $0x18] sm:$0xf]
    %v966 = vld [vmem:[#allocation7 + $0x1c] sm:$0xf]
    %v967 = vld [vmem:[#allocation7 + $0x20] sm:$0xf]
    %v968 = vld [vmem:[#allocation7 + $0x24] sm:$0xf]
    %v969 = vld [vmem:[#allocation7 + $0x28] sm:$0xf]
    %v970 = vld [vmem:[#allocation7 + $0x2c] sm:$0xf]
    %v971 = vld [vmem:[#allocation7 + $0x30] sm:$0xf]
    %v972 = vld [vmem:[#allocation7 + $0x34] sm:$0xf]
    %v973 = vld [vmem:[#allocation7 + $0x38] sm:$0xf]
    %v974 = vld [vmem:[#allocation7 + $0x3c] sm:$0xf]
    %v975 = vld [vmem:[%s8] sm:$0x1]
    %v977 = vperm.slane %v975, 0
    %v995 = vunpack.c.l.b16 %v959
    %v996 = vunpack.c.l.b16 %v960
    %v997 = vunpack.c.l.b16 %v961
    %v998 = vunpack.c.l.b16 %v962
    %v999 = vunpack.c.l.b16 %v963
    %v1000 = vunpack.c.l.b16 %v964
    %v1001 = vunpack.c.l.b16 %v965
    %v1002 = vunpack.c.l.b16 %v966
    %v1003 = vunpack.c.l.b16 %v967
    %v1004 = vunpack.c.l.b16 %v968
    %v1005 = vunpack.c.l.b16 %v969
    %v1006 = vunpack.c.l.b16 %v970
    %v1007 = vunpack.c.l.b16 %v971
    %v1008 = vunpack.c.l.b16 %v972
    %v1009 = vunpack.c.l.b16 %v973
    %v1010 = vunpack.c.l.b16 %v974
    %v1011 = vpack.c.b16 %v996, %v995
    %v1012 = vpack.c.b16 %v998, %v997
    %v1013 = vpack.c.b16 %v1000, %v999
    %v1014 = vpack.c.b16 %v1002, %v1001
    %v1015 = vpack.c.b16 %v1004, %v1003
    %v1016 = vpack.c.b16 %v1006, %v1005
    %v1017 = vpack.c.b16 %v1008, %v1007
    %v1018 = vpack.c.b16 %v1010, %v1009
    %1027 = vmatpush.bf16.msra.mxu0 %v1018
    %1028 = vmatpush.bf16.msra.mxu0 %v1017
    %1029 = vmatpush.bf16.msra.mxu0 %v1016
    %1030 = vmatpush.bf16.msra.mxu0 %v1015
    %1031 = vmatpush.bf16.msra.mxu0 %v1014
    %1032 = vmatpush.bf16.msra.mxu0 %v1013
    %1033 = vmatpush.bf16.msra.mxu0 %v1012
    %1034 = vmatpush.bf16.msra.mxu0 %v1011
    %1035 = vmatmul.bf16.gmra.mxu0 %v958
    %v1036 = vpop.f32.mrf.mxu0
    %v1037 = vadd.f32 %v977, %v1036
    %v1038 = vpop.f32.mrf.mxu0
    %v1039 = vadd.f32 %v977, %v1038
    %1040 = vdwg.mxu0
    %v1041 = vsub.f32 0.0, %v1037
    %v1042 = vsub.f32 0.0, %v1039
    %v1043 = vmul.f32 %v1041, 1.442695
    %v1044 = vpow.pop %v1043
    %v1045 = vmul.f32 %v1042, 1.442695
    %v1046 = vpow.pop %v1045
    %v1047 = vadd.f32 %v1044, 1.0
    %v1048 = vadd.f32 %v1046, 1.0
    %v1049 = vrcp.pop %v1047
    %v1050 = vmul.f32 %v1047, %v1049
    %v1051 = vsub.f32 1.0, %v1050
    %v1052 = vmul.f32 %v1049, %v1051
    %v1053 = vadd.f32 %v1049, %v1052
    %vm1054 = vweird.f32 %v1047
    %vm1055 = vweird.f32 %v1049
    %vm1056 = vmor %vm1054, %vm1055
    %v1057 = vsel %vm1056, %v1049, %v1053
    %v1058 = vand.u32 2147483647, %v1047
    %vm1059 = vcmp.eq.f32.partialorder %v1058, 8.507059e+37
    %v1060 = vand.u32 %v1047, 2147483648
    %v1061 = vor.u32 1.1754944e-38, %v1060
    %v1062 = vsel %vm1059, %v1061, %v1057
    %v1063 = vmul.f32 1.0, %v1062
    %v1064 = vrcp.pop %v1048
    %v1065 = vmul.f32 %v1048, %v1064
    %v1066 = vsub.f32 1.0, %v1065
    %v1067 = vmul.f32 %v1064, %v1066
    %v1068 = vadd.f32 %v1064, %v1067
    %vm1069 = vweird.f32 %v1048
    %vm1070 = vweird.f32 %v1064
    %vm1071 = vmor %vm1069, %vm1070
    %v1072 = vsel %vm1071, %v1064, %v1068
    %v1073 = vand.u32 2147483647, %v1048
    %vm1074 = vcmp.eq.f32.partialorder %v1073, 8.507059e+37
    %v1075 = vand.u32 %v1048, 2147483648
    %v1076 = vor.u32 1.1754944e-38, %v1075
    %v1077 = vsel %vm1074, %v1076, %v1072
    %v1078 = vmul.f32 1.0, %v1077
    %1079 = vst [vmem:[%s9] sm:$0xff] %v1063
    %1080 = vst [vmem:[%s9 + $0x8] sm:$0xff] %v1078
    // Predicated region
    $region54: #{reinforce_forward.1} parent=1 // pred_check
      _
    $region55: #{reinforce_forward.1} parent=1 // pred_check_branch
      %1082 = sbr.rel (0) target = $region57
    $region56: #{reinforce_forward.1} parent=1 // pred_region
      _
    $region57: #{reinforce_forward.1} parent=1 // pred_fallthru
      _
    // Predicated region
    $region58: #{reinforce_forward.1} parent=1 // pred_check
      _
    $region59: #{reinforce_forward.1} parent=1 // pred_check_branch
      %1084 = sbr.rel (0) target = $region61
    $region60: #{reinforce_forward.1} parent=1 // pred_region
      _
    $region61: #{reinforce_forward.1} parent=1 // pred_fallthru
      _
    %1085 = vsyncpa [#allocation3], 1
    %1086 = vsyncpa [#allocation5], 1
    %1087 = vsyncpa [#allocation8], 1

</llo_original>
